<compile_context>
chip_gen: v5e
topology: v5e:2x2
jax: 0.10.0
libtpu: 0.0.40
codegen_flags: <defaults>
</compile_context>

<pallas_src>
import functools

import jax
import jax.numpy as jnp
from jax import lax
from jax.experimental import pallas as pl
from jax.experimental.pallas import tpu as pltpu


def _tet_kernel(lutS_ref, x_ref, o_ref, *, dim, inv_binsize):
    """One (3, TN) pixel tile of one batch image.

    lutS_ref : (24, dim^3) f32 -- row 3*k + c = LUT[c, . + off_k], zero-padded
    x_ref    : (3, TN) native dtype
    o_ref    : (3, TN) native dtype
    """
    dim3 = dim * dim * dim
    d2 = dim * dim

    # Vectorized per-pixel prologue on the full (3, TN) block.
    x = x_ref[...].astype(jnp.float32)
    f = x * inv_binsize                       # = x / binsize
    idf = jnp.floor(f)
    frac = f - idf                            # fmod(x, binsize)/binsize for x>=0
    # Clamp cell ids so out-of-range pixels read the boundary cell.
    cell = jnp.clip(idf.astype(jnp.int32), 0, dim - 2)

    rd, gd, bd = frac[0:1, :], frac[1:2, :], frac[2:3, :]      # (1, TN)
    rid, gid, bid = cell[0:1, :], cell[1:2, :], cell[2:3, :]   # (1, TN)

    relu = lambda t: jnp.maximum(t, 0.0)
    # Branch-free tetrahedral corner weights (== 6-case decomposition).
    w000 = 1.0 - jnp.maximum(jnp.maximum(rd, gd), bd)
    w111 = jnp.minimum(jnp.minimum(rd, gd), bd)
    w100 = relu(rd - jnp.maximum(gd, bd))
    w010 = relu(gd - jnp.maximum(rd, bd))
    w001 = relu(bd - jnp.maximum(rd, gd))
    w110 = relu(jnp.minimum(rd, gd) - bd)
    w101 = relu(jnp.minimum(rd, bd) - gd)
    w011 = relu(jnp.minimum(gd, bd) - rd)

    # Single UNWEIGHTED base one-hot: 1 compare + 1 convert per element.
    base = rid + gid * dim + bid * d2                        # (1, TN) int32
    lattice = lax.broadcasted_iota(jnp.int32, (dim3, 1), 0)  # (dim^3, 1)
    hot = (lattice == base).astype(jnp.float32)              # (dim^3, TN)

    # One MXU matmul gathers all 8 corners of all 3 channels:
    # (24, dim^3) @ (dim^3, TN) -> (24, TN), row 3k+c = LUT[c, base + off_k].
    g = jnp.dot(lutS_ref[...], hot, preferred_element_type=jnp.float32)

    # O(TN) weighted-corner epilogue on (3, TN) slabs.
    out = (w000 * g[0:3, :] + w100 * g[3:6, :]
           + w010 * g[6:9, :] + w110 * g[9:12, :]
           + w001 * g[12:15, :] + w101 * g[15:18, :]
           + w011 * g[18:21, :] + w111 * g[21:24, :])
    o_ref[...] = out.astype(o_ref.dtype)


def _vmem_capacity_bytes():
    try:
        return int(pltpu.get_tpu_info().vmem_capacity_bytes)
    except Exception:
        return 64 * 1024 * 1024   # conservative fallback (v7x per-TC VMEM)


def _pick_tile_n(dim, hw, batch, lattice_budget_bytes):
    """Pixel-tile width: budget ~2x the f32 (dim^3, tn) one-hot (value plus
    compare/convert temporary) against VMEM; multiple of 128."""
    dim3 = dim ** 3
    tn = lattice_budget_bytes // (2 * 4 * dim3)
    tn = min(tn, 8192)
    tn = (tn // 128) * 128
    if tn < 128:
        # TODO(synk): implement the separable two-stage O(dim^2) gather so
        # large LUTs (dim >= ~24, e.g. dim=33) fit VMEM on all generations.
        raise ValueError(
            f"LUT dim={dim}: dense (dim^3, tile) one-hot does not fit the "
            f"{lattice_budget_bytes}-byte VMEM budget on this TPU generation.")
    if hw <= tn:
        if batch == 1 and hw >= 256:
            # Guarantee >= 2 pixel tiles so both v7x TensorCores get work.
            return ((pl.cdiv(hw, 2) + 127) // 128) * 128
        return hw   # single full-row block (full extent satisfies layout rule)
    return tn


def tetrahedral_interpolation(lut, x):
    """Forward pass of TetrahedralInterpolation. Returns (lut, output)."""
    B, C, H, W = x.shape
    assert C == 3, "Can only interpolate 3D images!"
    dim = lut.shape[-1]
    dim3 = dim ** 3
    d2 = dim * dim
    binsize = 1.000001 / (dim - 1)
    inv_binsize = 1.0 / binsize
    HW = H * W

    # Generation-aware VMEM sizing (v7x 64 MiB vs v5e/v6e 128 MiB).
    vmem_cap = _vmem_capacity_bytes()
    vmem_limit = min(vmem_cap // 2, 96 * 1024 * 1024)
    lattice_budget = vmem_limit // 2

    tn = _pick_tile_n(dim, HW, B, lattice_budget)
    n_tiles = pl.cdiv(HW, tn)   # ragged last tile handled by Pallas masking

    # Free, contiguous reshape; x stays in its native dtype (cast in-kernel).
    x3 = x.reshape(B, 3, HW)
    lut_flat = lut.reshape(3, dim3).astype(jnp.float32)

    # (24, dim^3) LHS: 8 corner-offset-shifted copies of the flat LUT,
    # zero-padded past dim^3 (clamped base never reads the padded tail).
    offsets = (0, 1, dim, dim + 1, d2, d2 + 1, d2 + dim, d2 + dim + 1)
    lut_stack = jnp.concatenate(
        [jnp.pad(lut_flat[:, off:], ((0, 0), (0, off))) for off in offsets],
        axis=0)

    kernel = functools.partial(_tet_kernel, dim=dim, inv_binsize=inv_binsize)
    out3 = pl.pallas_call(
        kernel,
        out_shape=jax.ShapeDtypeStruct((B, 3, HW), x.dtype),
        grid_spec=pltpu.PrefetchScalarGridSpec(
            num_scalar_prefetch=0,
            grid=(B, n_tiles),
            in_specs=[
                # Full shifted-LUT stack, constant block index -> VMEM-resident.
                pl.BlockSpec((24, dim3), lambda b, i: (0, 0)),
                # One (3, tn) pixel tile of one batch image; batch dim squeezed.
                pl.BlockSpec((None, 3, tn), lambda b, i: (b, 0, i)),
            ],
            out_specs=pl.BlockSpec((None, 3, tn), lambda b, i: (b, 0, i)),
        ),
        compiler_params=pltpu.CompilerParams(
            dimension_semantics=("parallel", "parallel"),
            vmem_limit_bytes=vmem_limit,
        ),
    )(lut_stack, x3)

    output = out3.reshape(B, 3, H, W)
    # The PyTorch autograd Function returns (lut, output).
    return lut, output


def tetrahedral_interpolation_ref(lut, x):
    """Pure-JAX reference (gather-based) for correctness checking."""
    dim = lut.shape[-1]
    binsize = 1.000001 / (dim - 1)
    inv_binsize = 1.0 / binsize

    xf = x.astype(jnp.float32)
    f = xf * inv_binsize
    idf = jnp.floor(f)
    frac = f - idf
    cell = jnp.clip(idf.astype(jnp.int32), 0, dim - 2)

    rd, gd, bd = frac[:, 0], frac[:, 1], frac[:, 2]
    rid, gid, bid = cell[:, 0], cell[:, 1], cell[:, 2]

    relu = lambda t: jnp.maximum(t, 0.0)
    w000 = 1.0 - jnp.maximum(jnp.maximum(rd, gd), bd)
    w111 = jnp.minimum(jnp.minimum(rd, gd), bd)
    w100 = relu(rd - jnp.maximum(gd, bd))
    w010 = relu(gd - jnp.maximum(rd, bd))
    w001 = relu(bd - jnp.maximum(rd, gd))
    w110 = relu(jnp.minimum(rd, gd) - bd)
    w101 = relu(jnp.minimum(rd, bd) - gd)
    w011 = relu(jnp.minimum(gd, bd) - rd)

    lut_flat = lut.reshape(3, -1).astype(jnp.float32)
    base = rid + gid * dim + bid * dim * dim

    def gather(off):
        idx = (base + off).reshape(-1)
        return lut_flat[:, idx].reshape((3,) + base.shape)

    out = (w000[None] * gather(0)
           + w100[None] * gather(1)
           + w010[None] * gather(dim)
           + w110[None] * gather(dim + 1)
           + w001[None] * gather(dim * dim)
           + w101[None] * gather(dim * dim + 1)
           + w011[None] * gather(dim * dim + dim)
           + w111[None] * gather(dim * dim + dim + 1))
    return jnp.transpose(out, (1, 0, 2, 3)).astype(x.dtype)


if __name__ == "__main__":
    key = jax.random.PRNGKey(0)
    k_lut, k_x = jax.random.split(key)

    dim = 8  # LUT resolution (dim^3 lattice points per channel)
    lut = jax.random.uniform(k_lut, (3, dim, dim, dim), dtype=jnp.float32)
    x = jax.random.uniform(k_x, (2, 3, 16, 16), dtype=jnp.float32)

    lut_out, out = tetrahedral_interpolation(lut, x)
    out = jax.block_until_ready(out)

    assert lut_out.shape == lut.shape
    assert out.shape == x.shape and out.dtype == x.dtype

    ref = tetrahedral_interpolation_ref(lut, x)
    if not bool(jnp.allclose(out, ref, rtol=1e-5, atol=1e-5)):
        raise AssertionError("Pallas kernel output mismatches JAX reference")

    print("KERNEL_OK")
</pallas_src>

<mosaic_0001>
module attributes {stable_mosaic.version = 11 : i64} {
  func.func @_tet_kernel(%arg0: i32, %arg1: i32, %arg2: memref<24x512xf32, #tpu.memory_space<vmem>>, %arg3: memref<1x3x256xf32, #tpu.memory_space<vmem>>, %arg4: memref<1x3x256xf32, #tpu.memory_space<vmem>>) attributes {dimension_semantics = [#tpu.dimension_semantics<parallel>, #tpu.dimension_semantics<parallel>], iteration_bounds = array<i64: 2, 1>, scalar_prefetch = 0 : i64, scratch_operands = 0 : i64, tpu.core_type = #tpu.core_type<tc>, window_params = [{pipeline_mode = #tpu.pipeline_mode<synchronous>, transform_indices = @transform_0, window_bounds = array<i64: 24, 512>}, {transform_indices = @transform_1, window_bounds = array<i64: 1, 3, 256>}, {transform_indices = @transform_2, window_bounds = array<i64: 1, 3, 256>}]} {
    %c0 = arith.constant 0 : index
    %c0_0 = arith.constant 0 : index
    %c0_1 = arith.constant 0 : index
    %0 = vector.load %arg3[%c0, %c0_0, %c0_1] : memref<1x3x256xf32, #tpu.memory_space<vmem>>, vector<1x3x256xf32>
    %1 = vector.shape_cast %0 : vector<1x3x256xf32> to vector<3x256xf32>
    %cst = arith.constant 6.99999285 : f32
    %2 = vector.broadcast %cst : f32 to vector<3x256xf32>
    %3 = arith.mulf %1, %2 : vector<3x256xf32>
    %4 = math.floor %3 : vector<3x256xf32>
    %5 = arith.subf %3, %4 : vector<3x256xf32>
    %6 = arith.fptosi %4 : vector<3x256xf32> to vector<3x256xi32>
    %c0_i32 = arith.constant 0 : i32
    %c6_i32 = arith.constant 6 : i32
    %7 = vector.broadcast %c0_i32 : i32 to vector<3x256xi32>
    %8 = arith.maxsi %7, %6 : vector<3x256xi32>
    %9 = vector.broadcast %c6_i32 : i32 to vector<3x256xi32>
    %10 = arith.minsi %9, %8 : vector<3x256xi32>
    %11 = vector.extract_strided_slice %5 {offsets = [0, 0], sizes = [1, 256], strides = [1, 1]} : vector<3x256xf32> to vector<1x256xf32>
    %12 = vector.extract_strided_slice %5 {offsets = [1, 0], sizes = [1, 256], strides = [1, 1]} : vector<3x256xf32> to vector<1x256xf32>
    %13 = vector.extract_strided_slice %5 {offsets = [2, 0], sizes = [1, 256], strides = [1, 1]} : vector<3x256xf32> to vector<1x256xf32>
    %14 = vector.extract_strided_slice %10 {offsets = [0, 0], sizes = [1, 256], strides = [1, 1]} : vector<3x256xi32> to vector<1x256xi32>
    %15 = vector.extract_strided_slice %10 {offsets = [1, 0], sizes = [1, 256], strides = [1, 1]} : vector<3x256xi32> to vector<1x256xi32>
    %16 = vector.extract_strided_slice %10 {offsets = [2, 0], sizes = [1, 256], strides = [1, 1]} : vector<3x256xi32> to vector<1x256xi32>
    %17 = arith.maximumf %11, %12 : vector<1x256xf32>
    %18 = arith.maximumf %17, %13 : vector<1x256xf32>
    %cst_2 = arith.constant 1.000000e+00 : f32
    %19 = vector.broadcast %cst_2 : f32 to vector<1x256xf32>
    %20 = arith.subf %19, %18 : vector<1x256xf32>
    %21 = arith.minimumf %11, %12 : vector<1x256xf32>
    %22 = arith.minimumf %21, %13 : vector<1x256xf32>
    %23 = arith.maximumf %12, %13 : vector<1x256xf32>
    %24 = arith.subf %11, %23 : vector<1x256xf32>
    %cst_3 = arith.constant 0.000000e+00 : f32
    %25 = vector.broadcast %cst_3 : f32 to vector<1x256xf32>
    %26 = arith.maximumf %24, %25 : vector<1x256xf32>
    %27 = arith.maximumf %11, %13 : vector<1x256xf32>
    %28 = arith.subf %12, %27 : vector<1x256xf32>
    %cst_4 = arith.constant 0.000000e+00 : f32
    %29 = vector.broadcast %cst_4 : f32 to vector<1x256xf32>
    %30 = arith.maximumf %28, %29 : vector<1x256xf32>
    %31 = arith.maximumf %11, %12 : vector<1x256xf32>
    %32 = arith.subf %13, %31 : vector<1x256xf32>
    %cst_5 = arith.constant 0.000000e+00 : f32
    %33 = vector.broadcast %cst_5 : f32 to vector<1x256xf32>
    %34 = arith.maximumf %32, %33 : vector<1x256xf32>
    %35 = arith.minimumf %11, %12 : vector<1x256xf32>
    %36 = arith.subf %35, %13 : vector<1x256xf32>
    %cst_6 = arith.constant 0.000000e+00 : f32
    %37 = vector.broadcast %cst_6 : f32 to vector<1x256xf32>
    %38 = arith.maximumf %36, %37 : vector<1x256xf32>
    %39 = arith.minimumf %11, %13 : vector<1x256xf32>
    %40 = arith.subf %39, %12 : vector<1x256xf32>
    %cst_7 = arith.constant 0.000000e+00 : f32
    %41 = vector.broadcast %cst_7 : f32 to vector<1x256xf32>
    %42 = arith.maximumf %40, %41 : vector<1x256xf32>
    %43 = arith.minimumf %12, %13 : vector<1x256xf32>
    %44 = arith.subf %43, %11 : vector<1x256xf32>
    %cst_8 = arith.constant 0.000000e+00 : f32
    %45 = vector.broadcast %cst_8 : f32 to vector<1x256xf32>
    %46 = arith.maximumf %44, %45 : vector<1x256xf32>
    %c8_i32 = arith.constant 8 : i32
    %47 = vector.broadcast %c8_i32 : i32 to vector<1x256xi32>
    %48 = arith.muli %15, %47 : vector<1x256xi32>
    %49 = arith.addi %14, %48 : vector<1x256xi32>
    %c64_i32 = arith.constant 64 : i32
    %50 = vector.broadcast %c64_i32 : i32 to vector<1x256xi32>
    %51 = arith.muli %16, %50 : vector<1x256xi32>
    %52 = arith.addi %49, %51 : vector<1x256xi32>
    %53 = tpu.iota {dimensions = array<i32: 0>} : vector<512x1xi32>
    %54 = vector.broadcast %53 : vector<512x1xi32> to vector<512x256xi32>
    %55 = vector.broadcast %52 : vector<1x256xi32> to vector<512x256xi32>
    %56 = arith.cmpi eq, %54, %55 : vector<512x256xi32>
    %57 = arith.extui %56 : vector<512x256xi1> to vector<512x256xi32>
    %58 = arith.sitofp %57 : vector<512x256xi32> to vector<512x256xf32>
    %c0_9 = arith.constant 0 : index
    %c0_10 = arith.constant 0 : index
    %59 = vector.load %arg2[%c0_9, %c0_10] : memref<24x512xf32, #tpu.memory_space<vmem>>, vector<24x512xf32>
    %cst_11 = arith.constant dense<0.000000e+00> : vector<24x256xf32>
    %60 = tpu.matmul %59, %58, %cst_11 {dimension_numbers = #tpu.dot_dimension_numbers<[1], [0], [0], [1], [0, 0, 1, 1], [], []>} : vector<24x512xf32>, vector<512x256xf32>, vector<24x256xf32> -> vector<24x256xf32>
    %61 = vector.extract_strided_slice %60 {offsets = [0, 0], sizes = [3, 256], strides = [1, 1]} : vector<24x256xf32> to vector<3x256xf32>
    %62 = vector.broadcast %20 : vector<1x256xf32> to vector<3x256xf32>
    %63 = arith.mulf %62, %61 : vector<3x256xf32>
    %64 = vector.extract_strided_slice %60 {offsets = [3, 0], sizes = [3, 256], strides = [1, 1]} : vector<24x256xf32> to vector<3x256xf32>
    %65 = vector.broadcast %26 : vector<1x256xf32> to vector<3x256xf32>
    %66 = arith.mulf %65, %64 : vector<3x256xf32>
    %67 = arith.addf %63, %66 : vector<3x256xf32>
    %68 = vector.extract_strided_slice %60 {offsets = [6, 0], sizes = [3, 256], strides = [1, 1]} : vector<24x256xf32> to vector<3x256xf32>
    %69 = vector.broadcast %30 : vector<1x256xf32> to vector<3x256xf32>
    %70 = arith.mulf %69, %68 : vector<3x256xf32>
    %71 = arith.addf %67, %70 : vector<3x256xf32>
    %72 = vector.extract_strided_slice %60 {offsets = [9, 0], sizes = [3, 256], strides = [1, 1]} : vector<24x256xf32> to vector<3x256xf32>
    %73 = vector.broadcast %38 : vector<1x256xf32> to vector<3x256xf32>
    %74 = arith.mulf %73, %72 : vector<3x256xf32>
    %75 = arith.addf %71, %74 : vector<3x256xf32>
    %76 = vector.extract_strided_slice %60 {offsets = [12, 0], sizes = [3, 256], strides = [1, 1]} : vector<24x256xf32> to vector<3x256xf32>
    %77 = vector.broadcast %34 : vector<1x256xf32> to vector<3x256xf32>
    %78 = arith.mulf %77, %76 : vector<3x256xf32>
    %79 = arith.addf %75, %78 : vector<3x256xf32>
    %80 = vector.extract_strided_slice %60 {offsets = [15, 0], sizes = [3, 256], strides = [1, 1]} : vector<24x256xf32> to vector<3x256xf32>
    %81 = vector.broadcast %42 : vector<1x256xf32> to vector<3x256xf32>
    %82 = arith.mulf %81, %80 : vector<3x256xf32>
    %83 = arith.addf %79, %82 : vector<3x256xf32>
    %84 = vector.extract_strided_slice %60 {offsets = [18, 0], sizes = [3, 256], strides = [1, 1]} : vector<24x256xf32> to vector<3x256xf32>
    %85 = vector.broadcast %46 : vector<1x256xf32> to vector<3x256xf32>
    %86 = arith.mulf %85, %84 : vector<3x256xf32>
    %87 = arith.addf %83, %86 : vector<3x256xf32>
    %88 = vector.extract_strided_slice %60 {offsets = [21, 0], sizes = [3, 256], strides = [1, 1]} : vector<24x256xf32> to vector<3x256xf32>
    %89 = vector.broadcast %22 : vector<1x256xf32> to vector<3x256xf32>
    %90 = arith.mulf %89, %88 : vector<3x256xf32>
    %91 = arith.addf %87, %90 : vector<3x256xf32>
    %c0_12 = arith.constant 0 : index
    %c0_13 = arith.constant 0 : index
    %c0_14 = arith.constant 0 : index
    %92 = vector.load %arg4[%c0_12, %c0_13, %c0_14] : memref<1x3x256xf32, #tpu.memory_space<vmem>>, vector<1x3x256xf32>
    %93 = vector.shape_cast %92 : vector<1x3x256xf32> to vector<3x256xf32>
    %94 = vector.shape_cast %91 : vector<3x256xf32> to vector<1x3x256xf32>
    tpu.vector_store %arg4[%c0_12, %c0_13, %c0_14], %94 {strides = array<i32>} : memref<1x3x256xf32, #tpu.memory_space<vmem>>, vector<1x3x256xf32>,
    return
  }
  func.func @transform_0(%arg0: i32, %arg1: i32) -> (i32, i32) {
    %c0_i32 = arith.constant 0 : i32
    %c0_i32_0 = arith.constant 0 : i32
    %c0_i32_1 = arith.constant 0 : i32
    return %c0_i32, %c0_i32_0 : i32, i32
  }
  func.func @transform_1(%arg0: i32, %arg1: i32) -> (i32, i32, i32) {
    %c0_i32 = arith.constant 0 : i32
    %c0_i32_0 = arith.constant 0 : i32
    return %arg0, %c0_i32, %arg1 : i32, i32, i32
  }
  func.func @transform_2(%arg0: i32, %arg1: i32) -> (i32, i32, i32) {
    %c0_i32 = arith.constant 0 : i32
    %c0_i32_0 = arith.constant 0 : i32
    return %arg0, %c0_i32, %arg1 : i32, i32, i32
  }
}

</mosaic_0001>

<llo_original>
// kernel: tpu_custom_call.1
$region0: #{tpu_custom_call.1}
  #allocation0 [shape = 'u32[]', space=smem, size = 0x4, offset = 0x4, fixed_abs, tag = 'smem constant byte address 0x4 - core index']
  #allocation1 [shape = 'u32[72,128]{1,0:T(1,128)}', space=vmem, size = 0x9000, scoped, tag = 'internal scratch']
  %s0 = inlined_call_operand.hbm [shape: f32[24,512], index: 0, kind: input, shape index: {}]
  %s1 = inlined_call_operand.vmem [shape: f32[2,3,256], index: 1, kind: input, shape index: {}]
  %s2 = inlined_call_operand.vmem [shape: f32[2,3,256], index: 2, kind: output, shape index: {}]
  %s3 = sld [smem:[#allocation0]]
  $region45: #{tpu_custom_call.1} parent=0
    _
  %s5 = ssub.s32 1, %s3
  %s6 = scalar_select 0, %s5, %s3
  $region1: #{tpu_custom_call.1} parent=0
    #allocation2 [shape = 'u8[49152]{0}', space=vmem, size = 0xc000, scoped, tag = 'input window, operand 0, single buffered']
    #allocation3 [shape = 's32[2]{0}', space=sflag, size = 0x8, scoped, tag = 'scoped memory for tpu_custom_call.1']
    %7 = vsyncpa [#allocation3], 0
    loop: start=0, step=1, limit=4
    $region2: #{tpu_custom_call.1} parent=1 // loop_pre_header
      _
    $region3: #{tpu_custom_call.1} parent=1 // loop_header
      %s9 = sphi 0, %s13
      %p10 = scmp.ge.s32.totalorder %s9, 4
      %s16 = sphi 0, %s28
      %s17 = sphi 0, %s24
      %s18 = sphi 0, %s16
      %s19 = sphi 0, %s17
      %s20 = sphi 0, %s18
      %s21 = sphi 0, %s19
      %s29 = sphi 0, %s29
      %s31 = sphi 0, %s29
      %s32 = sphi 0, %s31
      %s46 = sphi 0, %s32
      %s54 = sphi 0, %s56
      %s57 = sphi 0, %s54
      %s58 = sphi 0, %s57
      %s74 = sphi 0, %s58
      %s82 = sphi 0, %s84
      %s85 = sphi 0, %s82
      %s86 = sphi 0, %s85
      %s102 = sphi 0, %s86
    $region4: #{tpu_custom_call.1} parent=1 // loop_header_branch
      %12 = sbr.rel (%p10) target = $region8
    $region5: #{tpu_custom_call.1} parent=1 // loop_body
      %s14 = ssub.s32 %s9, 1
      %s15 = ssub.s32 %s9, 2
      %s22 = sadd.s32 1, %s17
      %p23 = scmp.ge.s32.totalorder %s22, 1
      %s24 = scalar_select %p23, 0, %s22
      %s25 = sadd.s32 1, %s16
      %s26 = scalar_select %p23, %s25, %s16
      %p27 = scmp.ge.s32.totalorder %s26, 2
      %s28 = scalar_select %p27, 0, %s26
      %s30 = sadd.s32 %s29, 1
      %p33 = scmp.eq.s32.totalorder %s9, 1
      %p34 = scmp.ne.s32.totalorder %s29, %s31
      %p35 = scmp.eq.s32.totalorder %s9, 0
      %p36 = por %p34, %p35
      %p37 = scmp.ne.s32.totalorder %s29, %s31
      %p38 = scmp.eq.s32.totalorder %s14, 1
      %p39 = por %p37, %p38
      %p40 = scmp.ne.s32.totalorder %s31, %s32
      %p41 = scmp.eq.s32.totalorder %s14, 0
      %p42 = por %p40, %p41
      %p43 = scmp.ne.s32.totalorder %s31, %s32
      %p44 = scmp.eq.s32.totalorder %s15, 1
      %p45 = por %p43, %p44
      %p47 = scmp.ne.s32.totalorder %s32, %s46
      %p48 = scmp.eq.s32.totalorder %s15, 0
      %p49 = por %p47, %p48
      %s50 = ssub.s32 %s16, %s28
      %s51 = ssub.s32 %s17, %s24
      %s52 = sor.u32 %s50, %s51
      %p53 = scmp.eq.s32.totalorder %s52, 0
      %s55 = sadd.s32 %s54, 1
      %s56 = scalar_select %p53, %s54, %s55
      %p59 = pneg %p53
      %p60 = scmp.eq.s32.totalorder %s9, 1
      %p61 = por %p59, %p60
      %p62 = scmp.ne.s32.totalorder %s54, %s57
      %p63 = scmp.eq.s32.totalorder %s9, 0
      %p64 = por %p62, %p63
      %p65 = scmp.ne.s32.totalorder %s54, %s57
      %p66 = scmp.eq.s32.totalorder %s14, 1
      %p67 = por %p65, %p66
      %p68 = scmp.ne.s32.totalorder %s57, %s58
      %p69 = scmp.eq.s32.totalorder %s14, 0
      %p70 = por %p68, %p69
      %p71 = scmp.ne.s32.totalorder %s57, %s58
      %p72 = scmp.eq.s32.totalorder %s15, 1
      %p73 = por %p71, %p72
      %p75 = scmp.ne.s32.totalorder %s58, %s74
      %p76 = scmp.eq.s32.totalorder %s15, 0
      %p77 = por %p75, %p76
      %s78 = ssub.s32 %s16, %s28
      %s79 = ssub.s32 %s17, %s24
      %s80 = sor.u32 %s78, %s79
      %p81 = scmp.eq.s32.totalorder %s80, 0
      %s83 = sadd.s32 %s82, 1
      %s84 = scalar_select %p81, %s82, %s83
      %p87 = pneg %p81
      %p88 = scmp.eq.s32.totalorder %s9, 1
      %p89 = por %p87, %p88
      %p90 = scmp.ne.s32.totalorder %s82, %s85
      %p91 = scmp.eq.s32.totalorder %s9, 0
      %p92 = por %p90, %p91
      %p93 = scmp.ne.s32.totalorder %s82, %s85
      %p94 = scmp.eq.s32.totalorder %s14, 1
      %p95 = por %p93, %p94
      %p96 = scmp.ne.s32.totalorder %s85, %s86
      %p97 = scmp.eq.s32.totalorder %s14, 0
      %p98 = por %p96, %p97
      %p99 = scmp.ne.s32.totalorder %s85, %s86
      %p100 = scmp.eq.s32.totalorder %s15, 1
      %p101 = por %p99, %p100
      %p103 = scmp.ne.s32.totalorder %s86, %s102
      %p104 = scmp.eq.s32.totalorder %s15, 0
      %p105 = por %p103, %p104
      %p106 = scmp.le.s32.totalorder 1, %s9
      %p107 = scmp.lt.s32.totalorder %s9, 3
      %p108 = pnand %p106, %p107
      %p109 = pneg %p108
      // Predicated region
      $region9: #{tpu_custom_call.1} parent=5 // pred_check
        _
      $region10: #{tpu_custom_call.1} parent=5 // pred_check_branch
        %111 = sbr.rel (%p108) target = $region12
      $region11: #{tpu_custom_call.1} parent=5 // pred_region
        %s112 = ssub.s32 %s9, 1
        // Predicated region
        $region13: #{tpu_custom_call.1} parent=11 // pred_check
          %p113 = pneg %p42
        $region14: #{tpu_custom_call.1} parent=11 // pred_check_branch
          %115 = sbr.rel (%p113) target = $region16
        $region15: #{tpu_custom_call.1} parent=11 // pred_region
          %117 = vsyncadd [#allocation3], 0
          %s118 = sshll.u32 %s0, 4
          %s119 = int_to_ptr.hbm [resolvable:$true] %s118
          %s120 = sshll.u32 [#allocation2], 4
          %s121 = int_to_ptr.vmem [resolvable:$true] %s120
          %126 = dma.hbm_to_vmem [thread:$0]  %s119, 1536, %s121, [#allocation3], 512, 512, 32
        $region16: #{tpu_custom_call.1} parent=11 // pred_fallthru
          _
      $region12: #{tpu_custom_call.1} parent=5 // pred_fallthru
        _
      %p127 = scmp.lt.s32.totalorder %s9, 2
      // Predicated region
      $region17: #{tpu_custom_call.1} parent=5 // pred_check
        %p128 = pneg %p127
      $region18: #{tpu_custom_call.1} parent=5 // pred_check_branch
        %130 = sbr.rel (%p128) target = $region20
      $region19: #{tpu_custom_call.1} parent=5 // pred_region
        // Predicated region
        $region21: #{tpu_custom_call.1} parent=19 // pred_check
          %p131 = pneg %p64
        $region22: #{tpu_custom_call.1} parent=19 // pred_check_branch
          %133 = sbr.rel (%p131) target = $region24
        $region23: #{tpu_custom_call.1} parent=19 // pred_region
          %s134 = smul.u32 2, %s17
          %p135 = scmp.lt.s32.totalorder %s16, 1
          %s136 = scalar_select %p135, %s16, 1
          %p137 = scmp.lt.s32.totalorder %s134, 1
          %s138 = scalar_select %p137, %s134, 1
          %s139 = smul.addr %s136, 2
          %s140 = sadd.s32 %s138, %s139
          %s141 = smul.addr %s140, 4
          %s142 = scalar_lea.vmem %s1, %s141
          %s143 = smul.u32 2, %s17
        $region24: #{tpu_custom_call.1} parent=19 // pred_fallthru
          _
      $region20: #{tpu_custom_call.1} parent=5 // pred_fallthru
        _
      %p144 = scmp.le.s32.totalorder 1, %s9
      %p145 = scmp.lt.s32.totalorder %s9, 3
      %p146 = pnand %p144, %p145
      %p147 = pneg %p146
      // Predicated region
      $region25: #{tpu_custom_call.1} parent=5 // pred_check
        _
      $region26: #{tpu_custom_call.1} parent=5 // pred_check_branch
        %149 = sbr.rel (%p146) target = $region28
      $region27: #{tpu_custom_call.1} parent=5 // pred_region
        %s150 = ssub.s32 %s9, 1
        // Predicated region
        $region29: #{tpu_custom_call.1} parent=27 // pred_check
          %p151 = pneg %p42
        $region30: #{tpu_custom_call.1} parent=27 // pred_check_branch
          %153 = sbr.rel (%p151) target = $region32
        $region31: #{tpu_custom_call.1} parent=27 // pred_region
          %155 = dma.done [#allocation3], 1536
        $region32: #{tpu_custom_call.1} parent=27 // pred_fallthru
          _
        %p156 = pneg %p42
        %p157 = pneg %p39
        %s158 = smul.u32 2, %s19
        %p159 = scmp.lt.s32.totalorder %s18, 1
        %s160 = scalar_select %p159, %s18, 1
        %p161 = scmp.lt.s32.totalorder %s158, 1
        %s162 = scalar_select %p161, %s158, 1
        %s163 = smul.addr %s160, 2
        %s164 = sadd.s32 %s162, %s163
        %s165 = smul.addr %s164, 4
        %s166 = scalar_lea.vmem %s1, %s165
        %p167 = pneg %p70
        %p168 = pneg %p67
        %p169 = pneg %p98
        %p170 = pneg %p95
        %s171 = smul.u32 2, %s19
        %p172 = scmp.lt.s32.totalorder %s18, 1
        %s173 = scalar_select %p172, %s18, 1
        %p174 = scmp.lt.s32.totalorder %s171, 1
        %s175 = scalar_select %p174, %s171, 1
        %s176 = smul.addr %s173, 2
        %s177 = sadd.s32 %s175, %s176
        %s178 = smul.addr %s177, 4
        %s179 = scalar_lea.vmem %s2, %s178
        %s180 = smul.u32 2, %s19
        %p181 = scmp.lt.s32.totalorder %s18, 1
        %s182 = scalar_select %p181, %s18, 1
        %p183 = scmp.lt.s32.totalorder %s180, 1
        %s184 = scalar_select %p183, %s180, 1
        %s185 = smul.addr %s182, 2
        %s186 = sadd.s32 %s184, %s185
        %s187 = smul.addr %s186, 4
        %s188 = scalar_lea.vmem %s1, %s187
        %s189 = smul.u32 2, %s19
        %s190 = smul.u32 2, %s19
        %p191 = scmp.lt.s32.totalorder %s18, 1
        %s192 = scalar_select %p191, %s18, 1
        %p193 = scmp.lt.s32.totalorder %s190, 1
        %s194 = scalar_select %p193, %s190, 1
        %s195 = smul.addr %s192, 2
        %s196 = sadd.s32 %s194, %s195
        %s197 = smul.addr %s196, 4
        %s198 = scalar_lea.vmem %s2, %s197
        %s199 = smul.u32 2, %s19
        %v200 = vld [vmem:[%s188] sm:$0x77]
        %v201 = vmul.f32 %v200, 6.999993
        %v202 = vfloor.f32 %v201
        %v203 = vsub.f32 %v201, %v202
        %v204 = vcvt.f32.s32.to.zero.pseudo %v202
        %vm205 = vcmp.gt.s32.totalorder %v204, 0
        %v206 = vsel %vm205, %v204, 0
        %vm207 = vcmp.lt.s32.totalorder %v206, 6
        %v208 = vsel %vm207, %v206, 6
        %v210 = vrot.slane %v203, 5
        %v211 = vrot.slane %v210, 4
        %v213 = vmax.f32 %v203, %v211
        %v214 = vrot.slane %v203, 6
        %v215 = vrot.slane %v214, 4
        %v217 = vmax.f32 %v213, %v215
        %v218 = vsub.f32 1.0, %v217
        %v219 = vmin.f32 %v203, %v211
        %v220 = vmin.f32 %v219, %v215
        %v222 = vrot.slane %v213, 5
        %v223 = vrot.slane %v222, 4
        %v225 = vsub.f32 %v203, %v223
        %v226 = vmax.f32 %v225, 0.0
        %v227 = vmax.f32 %v203, %v215
        %v229 = vrot.slane %v227, 7
        %v231 = vsub.f32 %v203, %v229
        %v232 = vmax.f32 %v231, 0.0
        %v233 = vrot.slane %v213, 6
        %v235 = vsub.f32 %v203, %v233
        %v236 = vmax.f32 %v235, 0.0
        %v237 = vsub.f32 %v219, %v215
        %v238 = vmax.f32 %v237, 0.0
        %v239 = vmin.f32 %v203, %v215
        %v240 = vsub.f32 %v239, %v211
        %v241 = vmax.f32 %v240, 0.0
        %v242 = vrot.slane %v203, 7
        %v244 = vsub.f32 %v219, %v242
        %v245 = vmax.f32 %v244, 0.0
        %v246 = vmul.u32 %v208, 8
        %v247 = vrot.slane %v246, 5
        %v248 = vrot.slane %v247, 4
        %v249 = vadd.s32 %v208, %v248
        %v250 = vmul.u32 %v208, 64
        %v251 = vrot.slane %v250, 6
        %v252 = vrot.slane %v251, 4
        %v253 = vadd.s32 %v249, %v252
        %v254 = vlaneseq
        %v255 = vshrl.u32 %v254, 7
        %v256 = vadd.s32 %v255, 8
        %v257 = vadd.s32 %v255, 16
        %v258 = vadd.s32 %v255, 24
        %v259 = vadd.s32 %v255, 32
        %v260 = vadd.s32 %v255, 40
        %v261 = vadd.s32 %v255, 48
        %v262 = vadd.s32 %v255, 56
        %v263 = vadd.s32 %v255, 64
        %v264 = vadd.s32 %v255, 72
        %v265 = vadd.s32 %v255, 80
        %v266 = vadd.s32 %v255, 88
        %v267 = vadd.s32 %v255, 96
        %v268 = vadd.s32 %v255, 104
        %v269 = vadd.s32 %v255, 112
        %v270 = vadd.s32 %v255, 120
        %v271 = vadd.s32 %v255, 128
        %v272 = vadd.s32 %v255, 136
        %v273 = vadd.s32 %v255, 144
        %v274 = vadd.s32 %v255, 152
        %v275 = vadd.s32 %v255, 160
        %v276 = vadd.s32 %v255, 168
        %v277 = vadd.s32 %v255, 176
        %v278 = vadd.s32 %v255, 184
        %v279 = vadd.s32 %v255, 192
        %v280 = vadd.s32 %v255, 200
        %v281 = vadd.s32 %v255, 208
        %v282 = vadd.s32 %v255, 216
        %v283 = vadd.s32 %v255, 224
        %v284 = vadd.s32 %v255, 232
        %v285 = vadd.s32 %v255, 240
        %v286 = vadd.s32 %v255, 248
        %v287 = vadd.s32 %v255, 256
        %v288 = vadd.s32 %v255, 264
        %v289 = vadd.s32 %v255, 272
        %v290 = vadd.s32 %v255, 280
        %v291 = vadd.s32 %v255, 288
        %v292 = vadd.s32 %v255, 296
        %v293 = vadd.s32 %v255, 304
        %v294 = vadd.s32 %v255, 312
        %v295 = vadd.s32 %v255, 320
        %v296 = vadd.s32 %v255, 328
        %v297 = vadd.s32 %v255, 336
        %v298 = vadd.s32 %v255, 344
        %v299 = vadd.s32 %v255, 352
        %v300 = vadd.s32 %v255, 360
        %v301 = vadd.s32 %v255, 368
        %v302 = vadd.s32 %v255, 376
        %v303 = vadd.s32 %v255, 384
        %v304 = vadd.s32 %v255, 392
        %v305 = vadd.s32 %v255, 400
        %v306 = vadd.s32 %v255, 408
        %v307 = vadd.s32 %v255, 416
        %v308 = vadd.s32 %v255, 424
        %v309 = vadd.s32 %v255, 432
        %v310 = vadd.s32 %v255, 440
        %v311 = vadd.s32 %v255, 448
        %v312 = vadd.s32 %v255, 456
        %v313 = vadd.s32 %v255, 464
        %v314 = vadd.s32 %v255, 472
        %v315 = vadd.s32 %v255, 480
        %v316 = vadd.s32 %v255, 488
        %v317 = vadd.s32 %v255, 496
        %v318 = vadd.s32 %v255, 504
        %v319 = vperm.slane %v253, 0
        %v320 = vperm.slane %v253, 4
        %v321 = vperm.slane %v319, 0
        %v322 = vperm.slane %v320, 0
        %vm323 = vcmp.eq.s32.totalorder %v255, %v321
        %vm324 = vcmp.eq.s32.totalorder %v255, %v322
        %vm325 = vcmp.eq.s32.totalorder %v256, %v321
        %vm326 = vcmp.eq.s32.totalorder %v256, %v322
        %vm327 = vcmp.eq.s32.totalorder %v257, %v321
        %vm328 = vcmp.eq.s32.totalorder %v257, %v322
        %vm329 = vcmp.eq.s32.totalorder %v258, %v321
        %vm330 = vcmp.eq.s32.totalorder %v258, %v322
        %vm331 = vcmp.eq.s32.totalorder %v259, %v321
        %vm332 = vcmp.eq.s32.totalorder %v259, %v322
        %vm333 = vcmp.eq.s32.totalorder %v260, %v321
        %vm334 = vcmp.eq.s32.totalorder %v260, %v322
        %vm335 = vcmp.eq.s32.totalorder %v261, %v321
        %vm336 = vcmp.eq.s32.totalorder %v261, %v322
        %vm337 = vcmp.eq.s32.totalorder %v262, %v321
        %vm338 = vcmp.eq.s32.totalorder %v262, %v322
        %vm339 = vcmp.eq.s32.totalorder %v263, %v321
        %vm340 = vcmp.eq.s32.totalorder %v263, %v322
        %vm341 = vcmp.eq.s32.totalorder %v264, %v321
        %vm342 = vcmp.eq.s32.totalorder %v264, %v322
        %vm343 = vcmp.eq.s32.totalorder %v265, %v321
        %vm344 = vcmp.eq.s32.totalorder %v265, %v322
        %vm345 = vcmp.eq.s32.totalorder %v266, %v321
        %vm346 = vcmp.eq.s32.totalorder %v266, %v322
        %vm347 = vcmp.eq.s32.totalorder %v267, %v321
        %vm348 = vcmp.eq.s32.totalorder %v267, %v322
        %vm349 = vcmp.eq.s32.totalorder %v268, %v321
        %vm350 = vcmp.eq.s32.totalorder %v268, %v322
        %vm351 = vcmp.eq.s32.totalorder %v269, %v321
        %vm352 = vcmp.eq.s32.totalorder %v269, %v322
        %vm353 = vcmp.eq.s32.totalorder %v270, %v321
        %vm354 = vcmp.eq.s32.totalorder %v270, %v322
        %vm355 = vcmp.eq.s32.totalorder %v271, %v321
        %vm356 = vcmp.eq.s32.totalorder %v271, %v322
        %vm357 = vcmp.eq.s32.totalorder %v272, %v321
        %vm358 = vcmp.eq.s32.totalorder %v272, %v322
        %vm359 = vcmp.eq.s32.totalorder %v273, %v321
        %vm360 = vcmp.eq.s32.totalorder %v273, %v322
        %vm361 = vcmp.eq.s32.totalorder %v274, %v321
        %vm362 = vcmp.eq.s32.totalorder %v274, %v322
        %vm363 = vcmp.eq.s32.totalorder %v275, %v321
        %vm364 = vcmp.eq.s32.totalorder %v275, %v322
        %vm365 = vcmp.eq.s32.totalorder %v276, %v321
        %vm366 = vcmp.eq.s32.totalorder %v276, %v322
        %vm367 = vcmp.eq.s32.totalorder %v277, %v321
        %vm368 = vcmp.eq.s32.totalorder %v277, %v322
        %vm369 = vcmp.eq.s32.totalorder %v278, %v321
        %vm370 = vcmp.eq.s32.totalorder %v278, %v322
        %vm371 = vcmp.eq.s32.totalorder %v279, %v321
        %vm372 = vcmp.eq.s32.totalorder %v279, %v322
        %vm373 = vcmp.eq.s32.totalorder %v280, %v321
        %vm374 = vcmp.eq.s32.totalorder %v280, %v322
        %vm375 = vcmp.eq.s32.totalorder %v281, %v321
        %vm376 = vcmp.eq.s32.totalorder %v281, %v322
        %vm377 = vcmp.eq.s32.totalorder %v282, %v321
        %vm378 = vcmp.eq.s32.totalorder %v282, %v322
        %vm379 = vcmp.eq.s32.totalorder %v283, %v321
        %vm380 = vcmp.eq.s32.totalorder %v283, %v322
        %vm381 = vcmp.eq.s32.totalorder %v284, %v321
        %vm382 = vcmp.eq.s32.totalorder %v284, %v322
        %vm383 = vcmp.eq.s32.totalorder %v285, %v321
        %vm384 = vcmp.eq.s32.totalorder %v285, %v322
        %vm385 = vcmp.eq.s32.totalorder %v286, %v321
        %vm386 = vcmp.eq.s32.totalorder %v286, %v322
        %vm387 = vcmp.eq.s32.totalorder %v287, %v321
        %vm388 = vcmp.eq.s32.totalorder %v287, %v322
        %vm389 = vcmp.eq.s32.totalorder %v288, %v321
        %vm390 = vcmp.eq.s32.totalorder %v288, %v322
        %vm391 = vcmp.eq.s32.totalorder %v289, %v321
        %vm392 = vcmp.eq.s32.totalorder %v289, %v322
        %vm393 = vcmp.eq.s32.totalorder %v290, %v321
        %vm394 = vcmp.eq.s32.totalorder %v290, %v322
        %vm395 = vcmp.eq.s32.totalorder %v291, %v321
        %vm396 = vcmp.eq.s32.totalorder %v291, %v322
        %vm397 = vcmp.eq.s32.totalorder %v292, %v321
        %vm398 = vcmp.eq.s32.totalorder %v292, %v322
        %vm399 = vcmp.eq.s32.totalorder %v293, %v321
        %vm400 = vcmp.eq.s32.totalorder %v293, %v322
        %vm401 = vcmp.eq.s32.totalorder %v294, %v321
        %vm402 = vcmp.eq.s32.totalorder %v294, %v322
        %vm403 = vcmp.eq.s32.totalorder %v295, %v321
        %vm404 = vcmp.eq.s32.totalorder %v295, %v322
        %vm405 = vcmp.eq.s32.totalorder %v296, %v321
        %vm406 = vcmp.eq.s32.totalorder %v296, %v322
        %vm407 = vcmp.eq.s32.totalorder %v297, %v321
        %vm408 = vcmp.eq.s32.totalorder %v297, %v322
        %vm409 = vcmp.eq.s32.totalorder %v298, %v321
        %vm410 = vcmp.eq.s32.totalorder %v298, %v322
        %vm411 = vcmp.eq.s32.totalorder %v299, %v321
        %vm412 = vcmp.eq.s32.totalorder %v299, %v322
        %vm413 = vcmp.eq.s32.totalorder %v300, %v321
        %vm414 = vcmp.eq.s32.totalorder %v300, %v322
        %vm415 = vcmp.eq.s32.totalorder %v301, %v321
        %vm416 = vcmp.eq.s32.totalorder %v301, %v322
        %vm417 = vcmp.eq.s32.totalorder %v302, %v321
        %vm418 = vcmp.eq.s32.totalorder %v302, %v322
        %vm419 = vcmp.eq.s32.totalorder %v303, %v321
        %vm420 = vcmp.eq.s32.totalorder %v303, %v322
        %vm421 = vcmp.eq.s32.totalorder %v304, %v321
        %vm422 = vcmp.eq.s32.totalorder %v304, %v322
        %vm423 = vcmp.eq.s32.totalorder %v305, %v321
        %vm424 = vcmp.eq.s32.totalorder %v305, %v322
        %vm425 = vcmp.eq.s32.totalorder %v306, %v321
        %vm426 = vcmp.eq.s32.totalorder %v306, %v322
        %vm427 = vcmp.eq.s32.totalorder %v307, %v321
        %vm428 = vcmp.eq.s32.totalorder %v307, %v322
        %vm429 = vcmp.eq.s32.totalorder %v308, %v321
        %vm430 = vcmp.eq.s32.totalorder %v308, %v322
        %vm431 = vcmp.eq.s32.totalorder %v309, %v321
        %vm432 = vcmp.eq.s32.totalorder %v309, %v322
        %vm433 = vcmp.eq.s32.totalorder %v310, %v321
        %vm434 = vcmp.eq.s32.totalorder %v310, %v322
        %vm435 = vcmp.eq.s32.totalorder %v311, %v321
        %vm436 = vcmp.eq.s32.totalorder %v311, %v322
        %vm437 = vcmp.eq.s32.totalorder %v312, %v321
        %vm438 = vcmp.eq.s32.totalorder %v312, %v322
        %vm439 = vcmp.eq.s32.totalorder %v313, %v321
        %vm440 = vcmp.eq.s32.totalorder %v313, %v322
        %vm441 = vcmp.eq.s32.totalorder %v314, %v321
        %vm442 = vcmp.eq.s32.totalorder %v314, %v322
        %vm443 = vcmp.eq.s32.totalorder %v315, %v321
        %vm444 = vcmp.eq.s32.totalorder %v315, %v322
        %vm445 = vcmp.eq.s32.totalorder %v316, %v321
        %vm446 = vcmp.eq.s32.totalorder %v316, %v322
        %vm447 = vcmp.eq.s32.totalorder %v317, %v321
        %vm448 = vcmp.eq.s32.totalorder %v317, %v322
        %vm449 = vcmp.eq.s32.totalorder %v318, %v321
        %vm450 = vcmp.eq.s32.totalorder %v318, %v322
        %v451 = vsel %vm323, 1, 0
        %v452 = vsel %vm324, 1, 0
        %v453 = vsel %vm325, 1, 0
        %v454 = vsel %vm326, 1, 0
        %v455 = vsel %vm327, 1, 0
        %v456 = vsel %vm328, 1, 0
        %v457 = vsel %vm329, 1, 0
        %v458 = vsel %vm330, 1, 0
        %v459 = vsel %vm331, 1, 0
        %v460 = vsel %vm332, 1, 0
        %v461 = vsel %vm333, 1, 0
        %v462 = vsel %vm334, 1, 0
        %v463 = vsel %vm335, 1, 0
        %v464 = vsel %vm336, 1, 0
        %v465 = vsel %vm337, 1, 0
        %v466 = vsel %vm338, 1, 0
        %v467 = vsel %vm339, 1, 0
        %v468 = vsel %vm340, 1, 0
        %v469 = vsel %vm341, 1, 0
        %v470 = vsel %vm342, 1, 0
        %v471 = vsel %vm343, 1, 0
        %v472 = vsel %vm344, 1, 0
        %v473 = vsel %vm345, 1, 0
        %v474 = vsel %vm346, 1, 0
        %v475 = vsel %vm347, 1, 0
        %v476 = vsel %vm348, 1, 0
        %v477 = vsel %vm349, 1, 0
        %v478 = vsel %vm350, 1, 0
        %v479 = vsel %vm351, 1, 0
        %v480 = vsel %vm352, 1, 0
        %v481 = vsel %vm353, 1, 0
        %v482 = vsel %vm354, 1, 0
        %v483 = vsel %vm355, 1, 0
        %v484 = vsel %vm356, 1, 0
        %v485 = vsel %vm357, 1, 0
        %v486 = vsel %vm358, 1, 0
        %v487 = vsel %vm359, 1, 0
        %v488 = vsel %vm360, 1, 0
        %v489 = vsel %vm361, 1, 0
        %v490 = vsel %vm362, 1, 0
        %v491 = vsel %vm363, 1, 0
        %v492 = vsel %vm364, 1, 0
        %v493 = vsel %vm365, 1, 0
        %v494 = vsel %vm366, 1, 0
        %v495 = vsel %vm367, 1, 0
        %v496 = vsel %vm368, 1, 0
        %v497 = vsel %vm369, 1, 0
        %v498 = vsel %vm370, 1, 0
        %v499 = vsel %vm371, 1, 0
        %v500 = vsel %vm372, 1, 0
        %v501 = vsel %vm373, 1, 0
        %v502 = vsel %vm374, 1, 0
        %v503 = vsel %vm375, 1, 0
        %v504 = vsel %vm376, 1, 0
        %v505 = vsel %vm377, 1, 0
        %v506 = vsel %vm378, 1, 0
        %v507 = vsel %vm379, 1, 0
        %v508 = vsel %vm380, 1, 0
        %v509 = vsel %vm381, 1, 0
        %v510 = vsel %vm382, 1, 0
        %v511 = vsel %vm383, 1, 0
        %v512 = vsel %vm384, 1, 0
        %v513 = vsel %vm385, 1, 0
        %v514 = vsel %vm386, 1, 0
        %v515 = vsel %vm387, 1, 0
        %v516 = vsel %vm388, 1, 0
        %v517 = vsel %vm389, 1, 0
        %v518 = vsel %vm390, 1, 0
        %v519 = vsel %vm391, 1, 0
        %v520 = vsel %vm392, 1, 0
        %v521 = vsel %vm393, 1, 0
        %v522 = vsel %vm394, 1, 0
        %v523 = vsel %vm395, 1, 0
        %v524 = vsel %vm396, 1, 0
        %v525 = vsel %vm397, 1, 0
        %v526 = vsel %vm398, 1, 0
        %v527 = vsel %vm399, 1, 0
        %v528 = vsel %vm400, 1, 0
        %v529 = vsel %vm401, 1, 0
        %v530 = vsel %vm402, 1, 0
        %v531 = vsel %vm403, 1, 0
        %v532 = vsel %vm404, 1, 0
        %v533 = vsel %vm405, 1, 0
        %v534 = vsel %vm406, 1, 0
        %v535 = vsel %vm407, 1, 0
        %v536 = vsel %vm408, 1, 0
        %v537 = vsel %vm409, 1, 0
        %v538 = vsel %vm410, 1, 0
        %v539 = vsel %vm411, 1, 0
        %v540 = vsel %vm412, 1, 0
        %v541 = vsel %vm413, 1, 0
        %v542 = vsel %vm414, 1, 0
        %v543 = vsel %vm415, 1, 0
        %v544 = vsel %vm416, 1, 0
        %v545 = vsel %vm417, 1, 0
        %v546 = vsel %vm418, 1, 0
        %v547 = vsel %vm419, 1, 0
        %v548 = vsel %vm420, 1, 0
        %v549 = vsel %vm421, 1, 0
        %v550 = vsel %vm422, 1, 0
        %v551 = vsel %vm423, 1, 0
        %v552 = vsel %vm424, 1, 0
        %v553 = vsel %vm425, 1, 0
        %v554 = vsel %vm426, 1, 0
        %v555 = vsel %vm427, 1, 0
        %v556 = vsel %vm428, 1, 0
        %v557 = vsel %vm429, 1, 0
        %v558 = vsel %vm430, 1, 0
        %v559 = vsel %vm431, 1, 0
        %v560 = vsel %vm432, 1, 0
        %v561 = vsel %vm433, 1, 0
        %v562 = vsel %vm434, 1, 0
        %v563 = vsel %vm435, 1, 0
        %v564 = vsel %vm436, 1, 0
        %v565 = vsel %vm437, 1, 0
        %v566 = vsel %vm438, 1, 0
        %v567 = vsel %vm439, 1, 0
        %v568 = vsel %vm440, 1, 0
        %v569 = vsel %vm441, 1, 0
        %v570 = vsel %vm442, 1, 0
        %v571 = vsel %vm443, 1, 0
        %v572 = vsel %vm444, 1, 0
        %v573 = vsel %vm445, 1, 0
        %v574 = vsel %vm446, 1, 0
        %v575 = vsel %vm447, 1, 0
        %v576 = vsel %vm448, 1, 0
        %v577 = vsel %vm449, 1, 0
        %v578 = vsel %vm450, 1, 0
        %v579 = vcvt.s32.f32 %v451
        %v580 = vcvt.s32.f32 %v452
        %v581 = vcvt.s32.f32 %v453
        %v582 = vcvt.s32.f32 %v454
        %v583 = vcvt.s32.f32 %v455
        %v584 = vcvt.s32.f32 %v456
        %v585 = vcvt.s32.f32 %v457
        %v586 = vcvt.s32.f32 %v458
        %v587 = vcvt.s32.f32 %v459
        %v588 = vcvt.s32.f32 %v460
        %v589 = vcvt.s32.f32 %v461
        %v590 = vcvt.s32.f32 %v462
        %v591 = vcvt.s32.f32 %v463
        %v592 = vcvt.s32.f32 %v464
        %v593 = vcvt.s32.f32 %v465
        %v594 = vcvt.s32.f32 %v466
        %v595 = vcvt.s32.f32 %v467
        %v596 = vcvt.s32.f32 %v468
        %v597 = vcvt.s32.f32 %v469
        %v598 = vcvt.s32.f32 %v470
        %v599 = vcvt.s32.f32 %v471
        %v600 = vcvt.s32.f32 %v472
        %v601 = vcvt.s32.f32 %v473
        %v602 = vcvt.s32.f32 %v474
        %v603 = vcvt.s32.f32 %v475
        %v604 = vcvt.s32.f32 %v476
        %v605 = vcvt.s32.f32 %v477
        %v606 = vcvt.s32.f32 %v478
        %v607 = vcvt.s32.f32 %v479
        %v608 = vcvt.s32.f32 %v480
        %v609 = vcvt.s32.f32 %v481
        %v610 = vcvt.s32.f32 %v482
        %v611 = vcvt.s32.f32 %v483
        %v612 = vcvt.s32.f32 %v484
        %v613 = vcvt.s32.f32 %v485
        %v614 = vcvt.s32.f32 %v486
        %v615 = vcvt.s32.f32 %v487
        %v616 = vcvt.s32.f32 %v488
        %v617 = vcvt.s32.f32 %v489
        %v618 = vcvt.s32.f32 %v490
        %v619 = vcvt.s32.f32 %v491
        %v620 = vcvt.s32.f32 %v492
        %v621 = vcvt.s32.f32 %v493
        %v622 = vcvt.s32.f32 %v494
        %v623 = vcvt.s32.f32 %v495
        %v624 = vcvt.s32.f32 %v496
        %v625 = vcvt.s32.f32 %v497
        %v626 = vcvt.s32.f32 %v498
        %v627 = vcvt.s32.f32 %v499
        %v628 = vcvt.s32.f32 %v500
        %v629 = vcvt.s32.f32 %v501
        %v630 = vcvt.s32.f32 %v502
        %v631 = vcvt.s32.f32 %v503
        %v632 = vcvt.s32.f32 %v504
        %v633 = vcvt.s32.f32 %v505
        %v634 = vcvt.s32.f32 %v506
        %v635 = vcvt.s32.f32 %v507
        %v636 = vcvt.s32.f32 %v508
        %v637 = vcvt.s32.f32 %v509
        %v638 = vcvt.s32.f32 %v510
        %v639 = vcvt.s32.f32 %v511
        %v640 = vcvt.s32.f32 %v512
        %v641 = vcvt.s32.f32 %v513
        %v642 = vcvt.s32.f32 %v514
        %v643 = vcvt.s32.f32 %v515
        %v644 = vcvt.s32.f32 %v516
        %v645 = vcvt.s32.f32 %v517
        %v646 = vcvt.s32.f32 %v518
        %v647 = vcvt.s32.f32 %v519
        %v648 = vcvt.s32.f32 %v520
        %v649 = vcvt.s32.f32 %v521
        %v650 = vcvt.s32.f32 %v522
        %v651 = vcvt.s32.f32 %v523
        %v652 = vcvt.s32.f32 %v524
        %v653 = vcvt.s32.f32 %v525
        %v654 = vcvt.s32.f32 %v526
        %v655 = vcvt.s32.f32 %v527
        %v656 = vcvt.s32.f32 %v528
        %v657 = vcvt.s32.f32 %v529
        %v658 = vcvt.s32.f32 %v530
        %v659 = vcvt.s32.f32 %v531
        %v660 = vcvt.s32.f32 %v532
        %v661 = vcvt.s32.f32 %v533
        %v662 = vcvt.s32.f32 %v534
        %v663 = vcvt.s32.f32 %v535
        %v664 = vcvt.s32.f32 %v536
        %v665 = vcvt.s32.f32 %v537
        %v666 = vcvt.s32.f32 %v538
        %v667 = vcvt.s32.f32 %v539
        %v668 = vcvt.s32.f32 %v540
        %v669 = vcvt.s32.f32 %v541
        %v670 = vcvt.s32.f32 %v542
        %v671 = vcvt.s32.f32 %v543
        %v672 = vcvt.s32.f32 %v544
        %v673 = vcvt.s32.f32 %v545
        %v674 = vcvt.s32.f32 %v546
        %v675 = vcvt.s32.f32 %v547
        %v676 = vcvt.s32.f32 %v548
        %v677 = vcvt.s32.f32 %v549
        %v678 = vcvt.s32.f32 %v550
        %v679 = vcvt.s32.f32 %v551
        %v680 = vcvt.s32.f32 %v552
        %v681 = vcvt.s32.f32 %v553
        %v682 = vcvt.s32.f32 %v554
        %v683 = vcvt.s32.f32 %v555
        %v684 = vcvt.s32.f32 %v556
        %v685 = vcvt.s32.f32 %v557
        %v686 = vcvt.s32.f32 %v558
        %v687 = vcvt.s32.f32 %v559
        %v688 = vcvt.s32.f32 %v560
        %v689 = vcvt.s32.f32 %v561
        %v690 = vcvt.s32.f32 %v562
        %v691 = vcvt.s32.f32 %v563
        %v692 = vcvt.s32.f32 %v564
        %v693 = vcvt.s32.f32 %v565
        %v694 = vcvt.s32.f32 %v566
        %v695 = vcvt.s32.f32 %v567
        %v696 = vcvt.s32.f32 %v568
        %v697 = vcvt.s32.f32 %v569
        %v698 = vcvt.s32.f32 %v570
        %v699 = vcvt.s32.f32 %v571
        %v700 = vcvt.s32.f32 %v572
        %v701 = vcvt.s32.f32 %v573
        %v702 = vcvt.s32.f32 %v574
        %v703 = vcvt.s32.f32 %v575
        %v704 = vcvt.s32.f32 %v576
        %v705 = vcvt.s32.f32 %v577
        %v706 = vcvt.s32.f32 %v578
        %v707 = vld [vmem:[#allocation2] sm:$0xff]
        %v708 = vld [vmem:[#allocation2 + $0x8] sm:$0xff]
        %v709 = vld [vmem:[#allocation2 + $0x10] sm:$0xff]
        %v710 = vld [vmem:[#allocation2 + $0x18] sm:$0xff]
        %v711 = vld [vmem:[#allocation2 + $0x20] sm:$0xff]
        %v712 = vld [vmem:[#allocation2 + $0x28] sm:$0xff]
        %v713 = vld [vmem:[#allocation2 + $0x30] sm:$0xff]
        %v714 = vld [vmem:[#allocation2 + $0x38] sm:$0xff]
        %v715 = vld [vmem:[#allocation2 + $0x40] sm:$0xff]
        %v716 = vld [vmem:[#allocation2 + $0x48] sm:$0xff]
        %v717 = vld [vmem:[#allocation2 + $0x50] sm:$0xff]
        %v718 = vld [vmem:[#allocation2 + $0x58] sm:$0xff]
        %719 = vmatpush.msra.mxu0 %v609
        %720 = vmatpush.msra.mxu0 %v607
        %721 = vmatpush.msra.mxu0 %v605
        %722 = vmatpush.msra.mxu0 %v603
        %723 = vmatpush.msra.mxu0 %v601
        %724 = vmatpush.msra.mxu0 %v599
        %725 = vmatpush.msra.mxu0 %v597
        %726 = vmatpush.msra.mxu0 %v595
        %727 = vmatpush.msra.mxu0 %v593
        %728 = vmatpush.msra.mxu0 %v591
        %729 = vmatpush.msra.mxu0 %v589
        %730 = vmatpush.msra.mxu0 %v587
        %731 = vmatpush.msra.mxu0 %v585
        %732 = vmatpush.msra.mxu0 %v583
        %733 = vmatpush.msra.mxu0 %v581
        %734 = vmatpush.msra.mxu0 %v579
        %735 = vmatmul.f32.gmra.mxu0 %v707
        %v736 = vpop.f32.mrf.mxu0
        %v737 = vadd.f32 0.0, %v736
        %738 = vmatmul.f32.gmra.mxu0 %v711
        %v739 = vpop.f32.mrf.mxu0
        %v740 = vadd.f32 0.0, %v739
        %741 = vmatmul.f32.gmra.mxu0 %v715
        %v742 = vpop.f32.mrf.mxu0
        %v743 = vadd.f32 0.0, %v742
        %744 = vdwg.mxu0
        %745 = vmatpush.msra.mxu0 %v641
        %746 = vmatpush.msra.mxu0 %v639
        %747 = vmatpush.msra.mxu0 %v637
        %748 = vmatpush.msra.mxu0 %v635
        %749 = vmatpush.msra.mxu0 %v633
        %750 = vmatpush.msra.mxu0 %v631
        %751 = vmatpush.msra.mxu0 %v629
        %752 = vmatpush.msra.mxu0 %v627
        %753 = vmatpush.msra.mxu0 %v625
        %754 = vmatpush.msra.mxu0 %v623
        %755 = vmatpush.msra.mxu0 %v621
        %756 = vmatpush.msra.mxu0 %v619
        %757 = vmatpush.msra.mxu0 %v617
        %758 = vmatpush.msra.mxu0 %v615
        %759 = vmatpush.msra.mxu0 %v613
        %760 = vmatpush.msra.mxu0 %v611
        %761 = vmatmul.f32.gmra.mxu0 %v708
        %v762 = vpop.f32.mrf.mxu0
        %v763 = vadd.f32 %v737, %v762
        %764 = vmatmul.f32.gmra.mxu0 %v712
        %v765 = vpop.f32.mrf.mxu0
        %v766 = vadd.f32 %v740, %v765
        %767 = vmatmul.f32.gmra.mxu0 %v716
        %v768 = vpop.f32.mrf.mxu0
        %v769 = vadd.f32 %v743, %v768
        %770 = vdwg.mxu0
        %771 = vmatpush.msra.mxu0 %v673
        %772 = vmatpush.msra.mxu0 %v671
        %773 = vmatpush.msra.mxu0 %v669
        %774 = vmatpush.msra.mxu0 %v667
        %775 = vmatpush.msra.mxu0 %v665
        %776 = vmatpush.msra.mxu0 %v663
        %777 = vmatpush.msra.mxu0 %v661
        %778 = vmatpush.msra.mxu0 %v659
        %779 = vmatpush.msra.mxu0 %v657
        %780 = vmatpush.msra.mxu0 %v655
        %781 = vmatpush.msra.mxu0 %v653
        %782 = vmatpush.msra.mxu0 %v651
        %783 = vmatpush.msra.mxu0 %v649
        %784 = vmatpush.msra.mxu0 %v647
        %785 = vmatpush.msra.mxu0 %v645
        %786 = vmatpush.msra.mxu0 %v643
        %787 = vmatmul.f32.gmra.mxu0 %v709
        %v788 = vpop.f32.mrf.mxu0
        %v789 = vadd.f32 %v763, %v788
        %790 = vmatmul.f32.gmra.mxu0 %v713
        %v791 = vpop.f32.mrf.mxu0
        %v792 = vadd.f32 %v766, %v791
        %793 = vmatmul.f32.gmra.mxu0 %v717
        %v794 = vpop.f32.mrf.mxu0
        %v795 = vadd.f32 %v769, %v794
        %796 = vdwg.mxu0
        %797 = vmatpush.msra.mxu0 %v705
        %798 = vmatpush.msra.mxu0 %v703
        %799 = vmatpush.msra.mxu0 %v701
        %800 = vmatpush.msra.mxu0 %v699
        %801 = vmatpush.msra.mxu0 %v697
        %802 = vmatpush.msra.mxu0 %v695
        %803 = vmatpush.msra.mxu0 %v693
        %804 = vmatpush.msra.mxu0 %v691
        %805 = vmatpush.msra.mxu0 %v689
        %806 = vmatpush.msra.mxu0 %v687
        %807 = vmatpush.msra.mxu0 %v685
        %808 = vmatpush.msra.mxu0 %v683
        %809 = vmatpush.msra.mxu0 %v681
        %810 = vmatpush.msra.mxu0 %v679
        %811 = vmatpush.msra.mxu0 %v677
        %812 = vmatpush.msra.mxu0 %v675
        %813 = vmatmul.f32.gmra.mxu0 %v710
        %v814 = vpop.f32.mrf.mxu0
        %v815 = vadd.f32 %v789, %v814
        %816 = vmatmul.f32.gmra.mxu0 %v714
        %v817 = vpop.f32.mrf.mxu0
        %v818 = vadd.f32 %v792, %v817
        %819 = vmatmul.f32.gmra.mxu0 %v718
        %v820 = vpop.f32.mrf.mxu0
        %v821 = vadd.f32 %v795, %v820
        %822 = vdwg.mxu0
        %823 = vmatpush.msra.mxu0 %v610
        %824 = vmatpush.msra.mxu0 %v608
        %825 = vmatpush.msra.mxu0 %v606
        %826 = vmatpush.msra.mxu0 %v604
        %827 = vmatpush.msra.mxu0 %v602
        %828 = vmatpush.msra.mxu0 %v600
        %829 = vmatpush.msra.mxu0 %v598
        %830 = vmatpush.msra.mxu0 %v596
        %831 = vmatpush.msra.mxu0 %v594
        %832 = vmatpush.msra.mxu0 %v592
        %833 = vmatpush.msra.mxu0 %v590
        %834 = vmatpush.msra.mxu0 %v588
        %835 = vmatpush.msra.mxu0 %v586
        %836 = vmatpush.msra.mxu0 %v584
        %837 = vmatpush.msra.mxu0 %v582
        %838 = vmatpush.msra.mxu0 %v580
        %839 = vmatmul.f32.gmra.mxu0 %v707
        %v840 = vpop.f32.mrf.mxu0
        %v841 = vadd.f32 0.0, %v840
        %842 = vmatmul.f32.gmra.mxu0 %v711
        %v843 = vpop.f32.mrf.mxu0
        %v844 = vadd.f32 0.0, %v843
        %845 = vmatmul.f32.gmra.mxu0 %v715
        %v846 = vpop.f32.mrf.mxu0
        %v847 = vadd.f32 0.0, %v846
        %848 = vdwg.mxu0
        %849 = vmatpush.msra.mxu0 %v642
        %850 = vmatpush.msra.mxu0 %v640
        %851 = vmatpush.msra.mxu0 %v638
        %852 = vmatpush.msra.mxu0 %v636
        %853 = vmatpush.msra.mxu0 %v634
        %854 = vmatpush.msra.mxu0 %v632
        %855 = vmatpush.msra.mxu0 %v630
        %856 = vmatpush.msra.mxu0 %v628
        %857 = vmatpush.msra.mxu0 %v626
        %858 = vmatpush.msra.mxu0 %v624
        %859 = vmatpush.msra.mxu0 %v622
        %860 = vmatpush.msra.mxu0 %v620
        %861 = vmatpush.msra.mxu0 %v618
        %862 = vmatpush.msra.mxu0 %v616
        %863 = vmatpush.msra.mxu0 %v614
        %864 = vmatpush.msra.mxu0 %v612
        %865 = vmatmul.f32.gmra.mxu0 %v708
        %v866 = vpop.f32.mrf.mxu0
        %v867 = vadd.f32 %v841, %v866
        %868 = vmatmul.f32.gmra.mxu0 %v712
        %v869 = vpop.f32.mrf.mxu0
        %v870 = vadd.f32 %v844, %v869
        %871 = vmatmul.f32.gmra.mxu0 %v716
        %v872 = vpop.f32.mrf.mxu0
        %v873 = vadd.f32 %v847, %v872
        %874 = vdwg.mxu0
        %875 = vmatpush.msra.mxu0 %v674
        %876 = vmatpush.msra.mxu0 %v672
        %877 = vmatpush.msra.mxu0 %v670
        %878 = vmatpush.msra.mxu0 %v668
        %879 = vmatpush.msra.mxu0 %v666
        %880 = vmatpush.msra.mxu0 %v664
        %881 = vmatpush.msra.mxu0 %v662
        %882 = vmatpush.msra.mxu0 %v660
        %883 = vmatpush.msra.mxu0 %v658
        %884 = vmatpush.msra.mxu0 %v656
        %885 = vmatpush.msra.mxu0 %v654
        %886 = vmatpush.msra.mxu0 %v652
        %887 = vmatpush.msra.mxu0 %v650
        %888 = vmatpush.msra.mxu0 %v648
        %889 = vmatpush.msra.mxu0 %v646
        %890 = vmatpush.msra.mxu0 %v644
        %891 = vmatmul.f32.gmra.mxu0 %v709
        %v892 = vpop.f32.mrf.mxu0
        %v893 = vadd.f32 %v867, %v892
        %894 = vmatmul.f32.gmra.mxu0 %v713
        %v895 = vpop.f32.mrf.mxu0
        %v896 = vadd.f32 %v870, %v895
        %897 = vmatmul.f32.gmra.mxu0 %v717
        %v898 = vpop.f32.mrf.mxu0
        %v899 = vadd.f32 %v873, %v898
        %900 = vdwg.mxu0
        %901 = vmatpush.msra.mxu0 %v706
        %902 = vmatpush.msra.mxu0 %v704
        %903 = vmatpush.msra.mxu0 %v702
        %904 = vmatpush.msra.mxu0 %v700
        %905 = vmatpush.msra.mxu0 %v698
        %906 = vmatpush.msra.mxu0 %v696
        %907 = vmatpush.msra.mxu0 %v694
        %908 = vmatpush.msra.mxu0 %v692
        %909 = vmatpush.msra.mxu0 %v690
        %910 = vmatpush.msra.mxu0 %v688
        %911 = vmatpush.msra.mxu0 %v686
        %912 = vmatpush.msra.mxu0 %v684
        %913 = vmatpush.msra.mxu0 %v682
        %914 = vmatpush.msra.mxu0 %v680
        %915 = vmatpush.msra.mxu0 %v678
        %916 = vmatpush.msra.mxu0 %v676
        %917 = vmatmul.f32.gmra.mxu0 %v710
        %v918 = vpop.f32.mrf.mxu0
        %v919 = vadd.f32 %v893, %v918
        %920 = vmatmul.f32.gmra.mxu0 %v714
        %v921 = vpop.f32.mrf.mxu0
        %v922 = vadd.f32 %v896, %v921
        %923 = vmatmul.f32.gmra.mxu0 %v718
        %v924 = vpop.f32.mrf.mxu0
        %v925 = vadd.f32 %v899, %v924
        %926 = vdwg.mxu0
        %v928 = vperm.slane %v218, 0
        %v929 = vperm.slane %v218, 4
        %v932 = vperm.slane %v928, 0
        %v933 = vperm.slane %v929, 0
        %v934 = vmul.f32 %v932, %v815
        %v935 = vmul.f32 %v933, %v919
        %v937 = vperm.slane %v226, 0
        %v938 = vperm.slane %v226, 4
        %v941 = vperm.slane %v937, 0
        %v942 = vperm.slane %v938, 0
        %v943 = vmul.f32 %v941, %v815
        %v944 = vmul.f32 %v942, %v919
        %v947 = vrot.slane %v943, 3
        %v948 = vrot.slane %v944, 3
        %v951 = vadd.f32 %v934, %v947
        %v952 = vadd.f32 %v935, %v948
        %v954 = vperm.slane %v232, 1
        %v955 = vperm.slane %v232, 5
        %v958 = vperm.slane %v954, 1
        %v959 = vperm.slane %v955, 1
        %v960 = vmul.f32 %v958, %v815
        %v961 = vmul.f32 %v959, %v919
        %v962 = vmul.f32 %v958, %v818
        %v963 = vmul.f32 %v959, %v922
        %vm968 = vcmask 1041408
        %v969 = vrot.slane %v960, 6
        %v970 = vrot.slane %v962, 6
        %v971 = vsel %vm968, %v969, %v970
        %v972 = vrot.slane %v961, 6
        %v973 = vrot.slane %v963, 6
        %v974 = vsel %vm968, %v972, %v973
        %v977 = vadd.f32 %v951, %v971
        %v978 = vadd.f32 %v952, %v974
        %v980 = vperm.slane %v238, 0
        %v981 = vperm.slane %v238, 4
        %v984 = vperm.slane %v980, 0
        %v985 = vperm.slane %v981, 0
        %v986 = vmul.f32 %v984, %v818
        %v987 = vmul.f32 %v985, %v922
        %v990 = vrot.slane %v986, 1
        %v991 = vrot.slane %v987, 1
        %v994 = vadd.f32 %v977, %v990
        %v995 = vadd.f32 %v978, %v991
        %v997 = vperm.slane %v236, 2
        %v998 = vperm.slane %v236, 6
        %v1001 = vperm.slane %v997, 2
        %v1002 = vperm.slane %v998, 2
        %v1003 = vmul.f32 %v1001, %v818
        %v1004 = vmul.f32 %v1002, %v922
        %v1007 = vrot.slane %v1003, 4
        %v1008 = vrot.slane %v1004, 4
        %v1011 = vadd.f32 %v994, %v1007
        %v1012 = vadd.f32 %v995, %v1008
        %v1014 = vperm.slane %v241, 0
        %v1015 = vperm.slane %v241, 4
        %v1018 = vperm.slane %v1014, 0
        %v1019 = vperm.slane %v1015, 0
        %v1020 = vmul.f32 %v1018, %v818
        %v1021 = vmul.f32 %v1019, %v922
        %v1022 = vmul.f32 %v1018, %v821
        %v1023 = vmul.f32 %v1019, %v925
        %vm1028 = vcmask 1040384
        %v1029 = vrot.slane %v1020, 7
        %v1030 = vrot.slane %v1022, 7
        %v1031 = vsel %vm1028, %v1029, %v1030
        %v1032 = vrot.slane %v1021, 7
        %v1033 = vrot.slane %v1023, 7
        %v1034 = vsel %vm1028, %v1032, %v1033
        %v1037 = vadd.f32 %v1011, %v1031
        %v1038 = vadd.f32 %v1012, %v1034
        %v1040 = vperm.slane %v245, 1
        %v1041 = vperm.slane %v245, 5
        %v1044 = vperm.slane %v1040, 1
        %v1045 = vperm.slane %v1041, 1
        %v1046 = vmul.f32 %v1044, %v821
        %v1047 = vmul.f32 %v1045, %v925
        %v1050 = vrot.slane %v1046, 2
        %v1051 = vrot.slane %v1047, 2
        %v1054 = vadd.f32 %v1037, %v1050
        %v1055 = vadd.f32 %v1038, %v1051
        %v1057 = vperm.slane %v220, 0
        %v1058 = vperm.slane %v220, 4
        %v1061 = vperm.slane %v1057, 0
        %v1062 = vperm.slane %v1058, 0
        %v1063 = vmul.f32 %v1061, %v821
        %v1064 = vmul.f32 %v1062, %v925
        %v1067 = vrot.slane %v1063, 5
        %v1068 = vrot.slane %v1064, 5
        %v1071 = vadd.f32 %v1054, %v1067
        %v1072 = vadd.f32 %v1055, %v1068
        %v1075 = vrot.slane %v1072, 4
        %vm1076 = vcmask 1043456
        %v1077 = vsel %vm1076, %v1071, %v1075
        %1079 = vst [vmem:[%s198] sm:$0x77] %v1077
        %s1080 = smul.u32 2, %s19
        %p1081 = scmp.lt.s32.totalorder %s18, 1
        %s1082 = scalar_select %p1081, %s18, 1
        %p1083 = scmp.lt.s32.totalorder %s1080, 1
        %s1084 = scalar_select %p1083, %s1080, 1
        %s1085 = smul.addr %s1082, 2
        %s1086 = sadd.s32 %s1084, %s1085
        %s1087 = smul.addr %s1086, 4
        %s1088 = scalar_lea.vmem %s2, %s1087
        // Predicated region
        $region33: #{tpu_custom_call.1} parent=27 // pred_check
          %p1089 = pneg %p95
        $region34: #{tpu_custom_call.1} parent=27 // pred_check_branch
          %1091 = sbr.rel (%p1089) target = $region36
        $region35: #{tpu_custom_call.1} parent=27 // pred_region
          %s1092 = smul.u32 2, %s19
        $region36: #{tpu_custom_call.1} parent=27 // pred_fallthru
          _
      $region28: #{tpu_custom_call.1} parent=5 // pred_fallthru
        _
      %p1093 = scmp.le.s32.totalorder 2, %s9
      // Predicated region
      $region37: #{tpu_custom_call.1} parent=5 // pred_check
        %p1094 = pneg %p1093
      $region38: #{tpu_custom_call.1} parent=5 // pred_check_branch
        %1096 = sbr.rel (%p1094) target = $region40
      $region39: #{tpu_custom_call.1} parent=5 // pred_region
        %s1097 = ssub.s32 %s9, 2
        // Predicated region
        $region41: #{tpu_custom_call.1} parent=39 // pred_check
          %p1098 = pneg %p101
        $region42: #{tpu_custom_call.1} parent=39 // pred_check_branch
          %1100 = sbr.rel (%p1098) target = $region44
        $region43: #{tpu_custom_call.1} parent=39 // pred_region
          %s1101 = smul.u32 2, %s21
          %p1102 = scmp.lt.s32.totalorder %s20, 1
          %s1103 = scalar_select %p1102, %s20, 1
          %p1104 = scmp.lt.s32.totalorder %s1101, 1
          %s1105 = scalar_select %p1104, %s1101, 1
          %s1106 = smul.addr %s1103, 2
          %s1107 = sadd.s32 %s1105, %s1106
          %s1108 = smul.addr %s1107, 4
          %s1109 = scalar_lea.vmem %s2, %s1108
        $region44: #{tpu_custom_call.1} parent=39 // pred_fallthru
          _
      $region40: #{tpu_custom_call.1} parent=5 // pred_fallthru
        _
    $region6: #{tpu_custom_call.1} parent=1 // loop_footer
      %s13 = sadd.s32 1, %s9
    $region7: #{tpu_custom_call.1} parent=1 // loop_footer_branch
      %8 = sbr.rel target = $region3
    $region8: #{tpu_custom_call.1} parent=1 // loop_exit
      _
    %1110 = vsyncpa [#allocation3], 1
    %s1111 = scalar_lea.sflag [#allocation3], 1
    %1112 = vsyncpa %s1111, 1

</llo_original>
